<compile_context>
chip_gen: v7x
topology: tpu7x:2x2x1
jax: 0.10.0
libtpu: 0.0.40
codegen_flags: <defaults>
</compile_context>

<pallas_src>
import functools

import jax
import jax.numpy as jnp
import numpy as np
from jax.experimental import pallas as pl
from jax.experimental.pallas import tpu as pltpu


def _bn_relu_shrink_kernel(x_ref, scale_ref, bias_ref, w_ref, cb_ref, o_ref):
    # x_ref:     (C, tn)    bf16 activations (B*T on lanes)
    # scale_ref: (C, 1)     folded BN scale  = gamma / sqrt(var + eps)
    # bias_ref:  (C, 1)     folded BN bias   = beta - mean * scale
    # w_ref:     (Cout, C)  1x1 conv weight (out, in)
    # cb_ref:    (Cout, 1)  conv bias
    # o_ref:     (Cout, tn) f32 output, lane-dense
    x = x_ref[...].astype(jnp.float32)            # upcast (v5e VPU has no bf16)
    h = x * scale_ref[...] + bias_ref[...]        # BatchNorm1d (eval)
    h = jnp.maximum(h, 0.0)                       # ReLU; Dropout(eval) = identity
    o_ref[...] = (
        jnp.dot(w_ref[...], h, preferred_element_type=jnp.float32)
        + cb_ref[...]
    )                                             # 1x1 Conv1d ("shrink")


def temporal_model_base_forward(
    x,
    bn_gamma,
    bn_beta,
    bn_running_mean,
    bn_running_var,
    shrink_weight,   # (num_joints_out*3, channels, 1)  -- PyTorch Conv1d layout
    shrink_bias,     # (num_joints_out*3,)
    *,
    num_joints_in,
    in_features,
    num_joints_out,
    eps=1e-5,
    tn=1024,                      # lane tile over B*T rows (multiple of 128)
    stream_dtype=jnp.bfloat16,    # activation streaming dtype (HBM traffic)
):
    assert x.ndim == 4
    assert x.shape[-2] == num_joints_in
    assert x.shape[-1] == in_features
    B, T, J, F = x.shape
    C = J * F
    Cout = num_joints_out * 3
    rows = B * T

    LANE = 128
    in_bytes = int(np.dtype(stream_dtype).itemsize)

    # ---- tile selection -----------------------------------------------------
    rows128 = pl.cdiv(rows, LANE) * LANE
    tn = max(LANE, (int(tn) // LANE) * LANE)
    tn = min(tn, rows128)
    # Keep double-buffered in/out blocks within ~16 MiB (safe on v7x's 64 MiB
    # physical / 32 MiB scoped VMEM; comfortable on v5e/v6e).
    per_lane_bytes = 2 * C * in_bytes + 2 * Cout * 4
    tn_budget = max(LANE, ((16 << 20) // per_lane_bytes) // LANE * LANE)
    tn = min(tn, tn_budget)
    # Prefer >= 2 grid steps so both v7x TensorCores can stream in parallel.
    if rows128 >= 2 * LANE and pl.cdiv(rows128, tn) < 2:
        tn = max(LANE, ((rows128 // 2) // LANE) * LANE)

    rows_padded = pl.cdiv(rows, tn) * tn
    grid = rows_padded // tn

    # ---- wrapper-side glue (layout plumbing, not compute) -------------------
    # Flatten joints/features into channels, transpose so B*T is the lane axis,
    # cast to the streaming dtype, and pad rows up to the tile multiple.
    xt = x.reshape(rows, C).T.astype(stream_dtype)            # (C, rows)
    if rows_padded != rows:
        xt = jnp.pad(xt, ((0, 0), (0, rows_padded - rows)))

    # Fold BN (eval mode) into a scale/bias pair, shaped (C, 1) for broadcast.
    scale1d = bn_gamma.astype(jnp.float32) / jnp.sqrt(
        bn_running_var.astype(jnp.float32) + eps
    )
    bias1d = bn_beta.astype(jnp.float32) - bn_running_mean.astype(jnp.float32) * scale1d
    scale = scale1d.reshape(C, 1)
    bias = bias1d.reshape(C, 1)

    # 1x1 conv == matmul over channels.
    W = shrink_weight.reshape(Cout, C).astype(jnp.float32)    # (Cout, C)
    cb = shrink_bias.reshape(Cout, 1).astype(jnp.float32)

    cost = pl.CostEstimate(
        flops=2 * rows_padded * C * Cout,
        transcendentals=0,
        bytes_accessed=(
            rows_padded * C * in_bytes        # streamed input
            + rows_padded * Cout * 4          # streamed output
            + C * Cout * 4 + (2 * C + Cout) * 4  # resident params
        ),
    )

    out_t = pl.pallas_call(
        _bn_relu_shrink_kernel,
        out_shape=jax.ShapeDtypeStruct((Cout, rows_padded), jnp.float32),
        grid_spec=pltpu.PrefetchScalarGridSpec(
            num_scalar_prefetch=0,
            grid=(grid,),
            in_specs=[
                pl.BlockSpec((C, tn), lambda i: (0, i)),
                pl.BlockSpec((C, 1), lambda i: (0, 0)),
                pl.BlockSpec((C, 1), lambda i: (0, 0)),
                pl.BlockSpec((Cout, C), lambda i: (0, 0)),
                pl.BlockSpec((Cout, 1), lambda i: (0, 0)),
            ],
            out_specs=pl.BlockSpec((Cout, tn), lambda i: (0, i)),
        ),
        compiler_params=pltpu.CompilerParams(
            dimension_semantics=("parallel",),
            vmem_limit_bytes=32 << 20,
        ),
        cost_estimate=cost,
    )(xt, scale, bias, W, cb)

    # Glue: drop row padding, transpose back, and reshape to
    # (B, T, num_joints_out, 3) to match
    #   x.permute(0, 2, 1).view(B, -1, num_joints_out, 3) in the PyTorch code.
    out = out_t[:, :rows].T                                    # (rows, Cout)
    return out.reshape(B, T, num_joints_out, 3)


def _reference_forward(x, gamma, beta, mean, var, w, b, num_joints_out, eps=1e-5):
    B, T, J, F = x.shape
    C = J * F
    h = x.reshape(B, T, C).astype(jnp.float32)
    h = (h - mean) / jnp.sqrt(var + eps) * gamma + beta
    h = jnp.maximum(h, 0.0)
    W = w.reshape(num_joints_out * 3, C)
    o = jnp.einsum("btc,oc->bto", h, W) + b
    return o.reshape(B, T, num_joints_out, 3)


if __name__ == "__main__":
    # Module config (filter_widths only constrain padding; the base forward
    # does not use them directly).
    num_joints_in = 4
    in_features = 4
    num_joints_out = 4
    channels = num_joints_in * in_features      # 16
    B, T = 2, 8

    key = jax.random.PRNGKey(0)
    k = jax.random.split(key, 7)
    x = jax.random.normal(k[0], (B, T, num_joints_in, in_features), jnp.float32)

    # Deterministic synthetic parameters.
    bn_gamma = 1.0 + 0.1 * jax.random.normal(k[1], (channels,), jnp.float32)
    bn_beta = 0.1 * jax.random.normal(k[2], (channels,), jnp.float32)
    bn_mean = 0.05 * jax.random.normal(k[3], (channels,), jnp.float32)
    bn_var = 1.0 + 0.1 * jax.random.uniform(k[4], (channels,), jnp.float32)
    shrink_w = 0.1 * jax.random.normal(
        k[5], (num_joints_out * 3, channels, 1), jnp.float32
    )
    shrink_b = 0.1 * jax.random.normal(k[6], (num_joints_out * 3,), jnp.float32)

    fwd = functools.partial(
        temporal_model_base_forward,
        num_joints_in=num_joints_in,
        in_features=in_features,
        num_joints_out=num_joints_out,
    )
    out = fwd(x, bn_gamma, bn_beta, bn_mean, bn_var, shrink_w, shrink_b)
    out = jax.block_until_ready(out)

    # Reference on the same bf16-quantized activations the kernel streams.
    xq = x.astype(jnp.bfloat16).astype(jnp.float32)
    ref = _reference_forward(
        xq, bn_gamma, bn_beta, bn_mean, bn_var, shrink_w, shrink_b, num_joints_out
    )
    assert out.shape == (B, T, num_joints_out, 3)
    assert jnp.allclose(out, ref, atol=1e-3, rtol=1e-3)
    print("KERNEL_OK")
</pallas_src>

<mosaic_0001>
module attributes {stable_mosaic.version = 11 : i64} {
  func.func @_bn_relu_shrink_kernel(%arg0: i32, %arg1: memref<16x128xbf16, #tpu.memory_space<vmem>>, %arg2: memref<16x1xf32, #tpu.memory_space<vmem>>, %arg3: memref<16x1xf32, #tpu.memory_space<vmem>>, %arg4: memref<12x16xf32, #tpu.memory_space<vmem>>, %arg5: memref<12x1xf32, #tpu.memory_space<vmem>>, %arg6: memref<12x128xf32, #tpu.memory_space<vmem>>) attributes {dimension_semantics = [#tpu.dimension_semantics<parallel>], iteration_bounds = array<i64: 1>, scalar_prefetch = 0 : i64, scratch_operands = 0 : i64, tpu.core_type = #tpu.core_type<tc>, window_params = [{transform_indices = @transform_0, window_bounds = array<i64: 16, 128>}, {pipeline_mode = #tpu.pipeline_mode<synchronous>, transform_indices = @transform_1, window_bounds = array<i64: 16, 1>}, {pipeline_mode = #tpu.pipeline_mode<synchronous>, transform_indices = @transform_2, window_bounds = array<i64: 16, 1>}, {pipeline_mode = #tpu.pipeline_mode<synchronous>, transform_indices = @transform_3, window_bounds = array<i64: 12, 16>}, {pipeline_mode = #tpu.pipeline_mode<synchronous>, transform_indices = @transform_4, window_bounds = array<i64: 12, 1>}, {transform_indices = @transform_5, window_bounds = array<i64: 12, 128>}]} {
    %c0 = arith.constant 0 : index
    %c0_0 = arith.constant 0 : index
    %0 = vector.load %arg1[%c0, %c0_0] : memref<16x128xbf16, #tpu.memory_space<vmem>>, vector<16x128xbf16>
    %1 = arith.extf %0 : vector<16x128xbf16> to vector<16x128xf32>
    %c0_1 = arith.constant 0 : index
    %c0_2 = arith.constant 0 : index
    %2 = vector.load %arg2[%c0_1, %c0_2] : memref<16x1xf32, #tpu.memory_space<vmem>>, vector<16x1xf32>
    %3 = vector.broadcast %2 : vector<16x1xf32> to vector<16x128xf32>
    %4 = arith.mulf %1, %3 : vector<16x128xf32>
    %c0_3 = arith.constant 0 : index
    %c0_4 = arith.constant 0 : index
    %5 = vector.load %arg3[%c0_3, %c0_4] : memref<16x1xf32, #tpu.memory_space<vmem>>, vector<16x1xf32>
    %6 = vector.broadcast %5 : vector<16x1xf32> to vector<16x128xf32>
    %7 = arith.addf %4, %6 : vector<16x128xf32>
    %cst = arith.constant 0.000000e+00 : f32
    %8 = vector.broadcast %cst : f32 to vector<16x128xf32>
    %9 = arith.maximumf %7, %8 : vector<16x128xf32>
    %c0_5 = arith.constant 0 : index
    %c0_6 = arith.constant 0 : index
    %10 = vector.load %arg4[%c0_5, %c0_6] : memref<12x16xf32, #tpu.memory_space<vmem>>, vector<12x16xf32>
    %cst_7 = arith.constant dense<0.000000e+00> : vector<12x128xf32>
    %11 = tpu.matmul %10, %9, %cst_7 {dimension_numbers = #tpu.dot_dimension_numbers<[1], [0], [0], [1], [0, 0, 1, 1], [], []>} : vector<12x16xf32>, vector<16x128xf32>, vector<12x128xf32> -> vector<12x128xf32>
    %c0_8 = arith.constant 0 : index
    %c0_9 = arith.constant 0 : index
    %12 = vector.load %arg5[%c0_8, %c0_9] : memref<12x1xf32, #tpu.memory_space<vmem>>, vector<12x1xf32>
    %13 = vector.broadcast %12 : vector<12x1xf32> to vector<12x128xf32>
    %14 = arith.addf %11, %13 : vector<12x128xf32>
    %c0_10 = arith.constant 0 : index
    %c0_11 = arith.constant 0 : index
    %15 = vector.load %arg6[%c0_10, %c0_11] : memref<12x128xf32, #tpu.memory_space<vmem>>, vector<12x128xf32>
    tpu.vector_store %arg6[%c0_10, %c0_11], %14 {strides = array<i32>} : memref<12x128xf32, #tpu.memory_space<vmem>>, vector<12x128xf32>,
    return
  }
  func.func @transform_0(%arg0: i32) -> (i32, i32) {
    %c0_i32 = arith.constant 0 : i32
    %c0_i32_0 = arith.constant 0 : i32
    return %c0_i32, %arg0 : i32, i32
  }
  func.func @transform_1(%arg0: i32) -> (i32, i32) {
    %c0_i32 = arith.constant 0 : i32
    %c0_i32_0 = arith.constant 0 : i32
    %c0_i32_1 = arith.constant 0 : i32
    return %c0_i32, %c0_i32_0 : i32, i32
  }
  func.func @transform_2(%arg0: i32) -> (i32, i32) {
    %c0_i32 = arith.constant 0 : i32
    %c0_i32_0 = arith.constant 0 : i32
    %c0_i32_1 = arith.constant 0 : i32
    return %c0_i32, %c0_i32_0 : i32, i32
  }
  func.func @transform_3(%arg0: i32) -> (i32, i32) {
    %c0_i32 = arith.constant 0 : i32
    %c0_i32_0 = arith.constant 0 : i32
    %c0_i32_1 = arith.constant 0 : i32
    return %c0_i32, %c0_i32_0 : i32, i32
  }
  func.func @transform_4(%arg0: i32) -> (i32, i32) {
    %c0_i32 = arith.constant 0 : i32
    %c0_i32_0 = arith.constant 0 : i32
    %c0_i32_1 = arith.constant 0 : i32
    return %c0_i32, %c0_i32_0 : i32, i32
  }
  func.func @transform_5(%arg0: i32) -> (i32, i32) {
    %c0_i32 = arith.constant 0 : i32
    %c0_i32_0 = arith.constant 0 : i32
    return %c0_i32, %arg0 : i32, i32
  }
}

</mosaic_0001>

<llo_original>
// kernel: tpu_custom_call.1
$region0: #{tpu_custom_call.1}
  #allocation0 [shape = 'u32[]', space=smem, size = 0x4, offset = 0x4, fixed_abs, tag = 'smem constant byte address 0x4 - core index']
  #allocation1 [shape = 'u32[144,128]{1,0:T(1,128)}', space=vmem, size = 0x12000, scoped, tag = 'internal scratch']
  %s0 = inlined_call_operand.vmem [shape: bf16[16,128], index: 0, kind: input, shape index: {}]
  %s1 = inlined_call_operand.vmem [shape: f32[16,1], index: 1, kind: input, shape index: {}]
  %s2 = inlined_call_operand.vmem [shape: f32[16,1], index: 2, kind: input, shape index: {}]
  %s3 = inlined_call_operand.vmem [shape: f32[12,16], index: 3, kind: input, shape index: {}]
  %s4 = inlined_call_operand.vmem [shape: f32[12,1], index: 4, kind: input, shape index: {}]
  %s5 = inlined_call_operand.hbm [shape: f32[12,128], index: 5, kind: output, shape index: {}]
  %s6 = sld [smem:[#allocation0]]
  $region30: #{tpu_custom_call.1} parent=0
    _
  %s8 = ssub.s32 1, %s6
  %s9 = scalar_select 0, %s8, %s6
  $region1: #{tpu_custom_call.1} parent=0
    #allocation2 [shape = 'u8[8192]{0}', space=vmem, size = 0x2000, scoped, tag = 'output window, operand 0, single buffered']
    #allocation3 [shape = 's32[1]{0}', space=sflag, size = 0x4, scoped, tag = 'scoped memory for tpu_custom_call.1']
    %10 = vsyncpa [#allocation3], 0
    // Predicated region
    $region2: #{tpu_custom_call.1} parent=1 // pred_check
      _
    $region3: #{tpu_custom_call.1} parent=1 // pred_check_branch
      %12 = sbr.rel (0) target = $region5
    $region4: #{tpu_custom_call.1} parent=1 // pred_region
      _
    $region5: #{tpu_custom_call.1} parent=1 // pred_fallthru
      _
    // Predicated region
    $region6: #{tpu_custom_call.1} parent=1 // pred_check
      _
    $region7: #{tpu_custom_call.1} parent=1 // pred_check_branch
      %14 = sbr.rel (0) target = $region9
    $region8: #{tpu_custom_call.1} parent=1 // pred_region
      _
    $region9: #{tpu_custom_call.1} parent=1 // pred_fallthru
      _
    // Predicated region
    $region10: #{tpu_custom_call.1} parent=1 // pred_check
      _
    $region11: #{tpu_custom_call.1} parent=1 // pred_check_branch
      %16 = sbr.rel (0) target = $region13
    $region12: #{tpu_custom_call.1} parent=1 // pred_region
      _
    $region13: #{tpu_custom_call.1} parent=1 // pred_fallthru
      _
    // Predicated region
    $region14: #{tpu_custom_call.1} parent=1 // pred_check
      _
    $region15: #{tpu_custom_call.1} parent=1 // pred_check_branch
      %18 = sbr.rel (0) target = $region17
    $region16: #{tpu_custom_call.1} parent=1 // pred_region
      _
    $region17: #{tpu_custom_call.1} parent=1 // pred_fallthru
      _
    // Predicated region
    $region18: #{tpu_custom_call.1} parent=1 // pred_check
      _
    $region19: #{tpu_custom_call.1} parent=1 // pred_check_branch
      %20 = sbr.rel (0) target = $region21
    $region20: #{tpu_custom_call.1} parent=1 // pred_region
      _
    $region21: #{tpu_custom_call.1} parent=1 // pred_fallthru
      _
    %v21 = vld [vmem:[%s0] sm:$0xf]
    %v22 = vld [vmem:[%s0 + $0x4] sm:$0xf]
    %v23 = vunpack.c.l.bf16 %v21
    %v24 = vunpack.c.l.bf16 %v22
    %v25 = vld [vmem:[%s1] sm:$0xff]
    %v26 = vld [vmem:[%s1 + $0x8] sm:$0xff]
    %28 = vset.pattern.permute.xlu0 0
    %29 = vperm.xlu0 %28, %v25
    %v30 = vpop.permute.xlu0 %29
    %33 = vset.pattern.permute.xlu0 0
    %34 = vperm.xlu0 %33, %v26
    %v35 = vpop.permute.xlu0 %34
    %v37 = vmul.f32 %v23, %v30
    %v38 = vmul.f32 %v24, %v35
    %v39 = vld [vmem:[%s2] sm:$0xff]
    %v40 = vld [vmem:[%s2 + $0x8] sm:$0xff]
    %42 = vset.pattern.permute.xlu0 0
    %43 = vperm.xlu0 %42, %v39
    %v44 = vpop.permute.xlu0 %43
    %47 = vset.pattern.permute.xlu0 0
    %48 = vperm.xlu0 %47, %v40
    %v49 = vpop.permute.xlu0 %48
    %v51 = vadd.f32 %v37, %v44
    %v52 = vadd.f32 %v38, %v49
    %v53 = vmax.f32 %v51, 0.0
    %v54 = vmax.f32 %v52, 0.0
    %v55 = vld [vmem:[%s3] sm:$0xff]
    %v56 = vld [vmem:[%s3 + $0x8] sm:$0xf]
    %v57 = vld [vmem:[%s4] sm:$0xff]
    %v58 = vld [vmem:[%s4 + $0x8] sm:$0xf]
    %60 = vset.pattern.permute.xlu0 0
    %61 = vperm.xlu0 %60, %v57
    %v62 = vpop.permute.xlu0 %61
    %65 = vset.pattern.permute.xlu0 0
    %66 = vperm.xlu0 %65, %v58
    %v67 = vpop.permute.xlu0 %66
    %vm69 = vcmask 130048
    %v71 = vsel %vm69, %v55, 0
    %v74 = vsel %vm69, %v56, 0
    %76 = vmatprep.subr.mxu0 0.0
    %77 = vmatpush1.msra.mxu0 %v53
    %78 = vmatprep.subr.mxu0 0.0
    %79 = vmatpush1.msra.mxu0 %v54
    %80 = vmatprep.subr.mxu0 0.0
    %81 = vmatpush1.msra.mxu0 0.0
    %82 = vmatprep.subr.mxu0 0.0
    %83 = vmatpush1.msra.mxu0 0.0
    %84 = vmatprep.subr.mxu0 0.0
    %85 = vmatpush1.msra.mxu0 0.0
    %86 = vmatprep.subr.mxu0 0.0
    %87 = vmatpush1.msra.mxu0 0.0
    %88 = vmatprep.subr.mxu0 0.0
    %89 = vmatpush1.msra.mxu0 0.0
    %90 = vmatprep.subr.mxu0 0.0
    %91 = vmatpush1.msra.mxu0 0.0
    %92 = vmatprep.subr.mxu0 0.0
    %93 = vmatpush1.msra.mxu0 0.0
    %94 = vmatprep.subr.mxu0 0.0
    %95 = vmatpush1.msra.mxu0 0.0
    %96 = vmatprep.subr.mxu0 0.0
    %97 = vmatpush1.msra.mxu0 0.0
    %98 = vmatprep.subr.mxu0 0.0
    %99 = vmatpush1.msra.mxu0 0.0
    %100 = vmatprep.subr.mxu0 0.0
    %101 = vmatpush1.msra.mxu0 0.0
    %102 = vmatprep.subr.mxu0 0.0
    %103 = vmatpush1.msra.mxu0 0.0
    %104 = vmatprep.subr.mxu0 0.0
    %105 = vmatpush1.msra.mxu0 0.0
    %106 = vmatprep.subr.mxu0 0.0
    %107 = vmatpush1.msra.mxu0 0.0
    %108 = vmatprep.subr.mxu0 0.0
    %109 = vmatpush1.msra.mxu0 0.0
    %110 = vmatprep.subr.mxu0 0.0
    %111 = vmatpush1.msra.mxu0 0.0
    %112 = vmatprep.subr.mxu0 0.0
    %113 = vmatpush1.msra.mxu0 0.0
    %114 = vmatprep.subr.mxu0 0.0
    %115 = vmatpush1.msra.mxu0 0.0
    %116 = vmatprep.subr.mxu0 0.0
    %117 = vmatpush1.msra.mxu0 0.0
    %118 = vmatprep.subr.mxu0 0.0
    %119 = vmatpush1.msra.mxu0 0.0
    %120 = vmatprep.subr.mxu0 0.0
    %121 = vmatpush1.msra.mxu0 0.0
    %122 = vmatprep.subr.mxu0 0.0
    %123 = vmatpush1.msra.mxu0 0.0
    %124 = vmatprep.subr.mxu0 0.0
    %125 = vmatpush1.msra.mxu0 0.0
    %126 = vmatprep.subr.mxu0 0.0
    %127 = vmatpush1.msra.mxu0 0.0
    %128 = vmatprep.subr.mxu0 0.0
    %129 = vmatpush1.msra.mxu0 0.0
    %130 = vmatprep.subr.mxu0 0.0
    %131 = vmatpush1.msra.mxu0 0.0
    %132 = vmatprep.subr.mxu0 0.0
    %133 = vmatpush1.msra.mxu0 0.0
    %134 = vmatprep.subr.mxu0 0.0
    %135 = vmatpush1.msra.mxu0 0.0
    %136 = vmatprep.subr.mxu0 0.0
    %137 = vmatpush1.msra.mxu0 0.0
    %138 = vmatprep.subr.mxu0 0.0
    %139 = vmatpush1.msra.mxu0 0.0
    %140 = vmatprep.mubr.f32.mxu0 0.0
    %141 = vmatmul.mubr.f32.gmra.mrb[0].mxu0 %v71
    %v142 = vpop.f32.mrb[0].mxu0
    %v143 = vadd.f32 %v62, %v142
    %v144 = vpop.f32.mrb[0].mxu0
    %145 = vmatprep.mubr.f32.mxu0 0.0
    %146 = vmatmul.mubr.f32.gmra.mrb[0].mxu0 %v74
    %v147 = vpop.f32.mrb[0].mxu0
    %v148 = vadd.f32 %v67, %v147
    %v149 = vpop.f32.mrb[0].mxu0
    %150 = vdwg.mxu0
    %151 = vst [vmem:[#allocation2] sm:$0xff] %v143
    %152 = vst [vmem:[#allocation2 + $0x8] sm:$0xf] %v148
    // Predicated region
    $region22: #{tpu_custom_call.1} parent=1 // pred_check
      _
    $region23: #{tpu_custom_call.1} parent=1 // pred_check_branch
      %154 = sbr.rel (0) target = $region25
    $region24: #{tpu_custom_call.1} parent=1 // pred_region
      %s156 = ssub.s32 256, 256
      %157 = vsyncadd [#allocation3], %s156
      %s158 = sshll.u32 [#allocation2], 4
      %s159 = int_to_ptr.vmem [resolvable:$true] %s158
      %164 = dma.vmem_to_hbm [thread:$0]  %s159, 256, %s5, [#allocation3], 128, 128, 8
    $region25: #{tpu_custom_call.1} parent=1 // pred_fallthru
      _
    // Predicated region
    $region26: #{tpu_custom_call.1} parent=1 // pred_check
      _
    $region27: #{tpu_custom_call.1} parent=1 // pred_check_branch
      %166 = sbr.rel (0) target = $region29
    $region28: #{tpu_custom_call.1} parent=1 // pred_region
      %167 = dma.done [#allocation3], 256
    $region29: #{tpu_custom_call.1} parent=1 // pred_fallthru
      _
    %168 = vsyncpa [#allocation3], 1

</llo_original>
